<compile_context>
chip_gen: v7x
topology: tpu7x:2x2x1
jax: 0.10.0
libtpu: 0.0.40
codegen_flags: <defaults>
</compile_context>

<pallas_src>
import functools

import jax
import jax.numpy as jnp
from jax.experimental import pallas as pl
from jax.experimental.pallas import tpu as pltpu


# --------------------------------------------------------------------------- #
# Kernel
# --------------------------------------------------------------------------- #
def _gru_policy_kernel(x_ref, h0_ref, wih_ref, whh_ref, b_in_ref, bhh_n_ref,
                       wa_ref, ba_ref, probs_ref, hout_ref, *, approx_recip):
    T, B, I = x_ref.shape            # B here is the per-block batch tile
    H = h0_ref.shape[-1]
    H3 = 3 * H

    # ---- Hoisted input projection, kept entirely in vregs -------------------
    x = x_ref[...]                   # (T, B, I)
    w_in = wih_ref[...]              # (I, 3H)
    b_in = b_in_ref[...]             # (1, 3H)  (bih + [bhh_r, bhh_z, 0])
    if I == 1:
        gi = x * w_in + b_in         # (T,B,1)*(1,3H) -> (T,B,3H), pure VPU
    else:
        gi = (jnp.dot(x.reshape(T * B, I).astype(w_in.dtype), w_in,
                      preferred_element_type=jnp.float32).reshape(T, B, H3)
              + b_in)
    gi = gi.astype(jnp.float32)

    # Loop-invariant loads hoisted out of the recurrence.
    w_hh = whh_ref[...]              # (H, 3H)
    bhh_n = bhh_n_ref[...]           # (1, H)

    # ---- Serial recurrence, unrolled; h_t stays in vregs --------------------
    h = h0_ref[0]                    # (B, H), f32 carried recurrence state
    hs = []
    for t in range(T):               # static T, intended T == 1
        gi_t = gi[t]                 # (B, 3H)
        gh = jnp.dot(h.astype(w_hh.dtype), w_hh,
                     preferred_element_type=jnp.float32)        # (B, 3H)
        r = jax.nn.sigmoid(gi_t[:, 0:H] + gh[:, 0:H])
        z = jax.nn.sigmoid(gi_t[:, H:2 * H] + gh[:, H:2 * H])
        n = jnp.tanh(gi_t[:, 2 * H:H3] + r * (gh[:, 2 * H:H3] + bhh_n))
        h = (1.0 - z) * n + z * h
        hs.append(h)
    hout_ref[0] = h                  # written after last read of h0 (alias-safe)

    # ---- Affine + softmax, one batched matmul over all timesteps ------------
    h_all = hs[0] if T == 1 else jnp.concatenate(hs, axis=0)    # (T*B, H)
    logits = jnp.dot(h_all.astype(wa_ref.dtype), wa_ref[...],
                     preferred_element_type=jnp.float32) + ba_ref[...]
    m = jnp.max(logits, axis=-1, keepdims=True)
    e = jnp.exp(logits - m)
    denom = jnp.sum(e, axis=-1, keepdims=True)
    if approx_recip:
        probs = e * pl.reciprocal(denom, approx=True)   # EUP slot, ~free
    else:
        probs = e / denom                               # exact (validation builds)
    probs_ref[...] = probs.reshape(T, B, -1)


# --------------------------------------------------------------------------- #
# Wrapper
# --------------------------------------------------------------------------- #
@functools.partial(jax.jit, static_argnames=("approx_recip",))
def _gru_policy_pallas(x, h0, wih, whh, b_in, bhh_n, wa, ba, *,
                       approx_recip=True):
    T, B, I = x.shape
    H = h0.shape[-1]
    A_pad = wa.shape[-1]

    # Batch tiling: for large B split into 128-row blocks (>= 8 sublanes each)
    # so v7x megacore can shard across cores and VMEM residency stays bounded;
    # for small B this collapses to a single program.
    block_b = 128 if (B % 128 == 0) else B
    grid = (B // block_b,)

    def full_spec(arr):
        shape = arr.shape
        return pl.BlockSpec(shape, lambda b, _s=shape: tuple(0 for _ in _s))

    in_specs = [
        pl.BlockSpec((T, block_b, I), lambda b: (0, b, 0)),   # x
        pl.BlockSpec((1, block_b, H), lambda b: (0, b, 0)),   # h0
        full_spec(wih), full_spec(whh), full_spec(b_in),
        full_spec(bhh_n), full_spec(wa), full_spec(ba),
    ]
    out_specs = (
        pl.BlockSpec((T, block_b, A_pad), lambda b: (0, b, 0)),   # probs
        pl.BlockSpec((1, block_b, H), lambda b: (0, b, 0)),       # h_out
    )

    # Advisory cost estimate so XLA can overlap the (weight-DMA-dominated)
    # kernel with surrounding host/env-step work.
    flops = 2 * T * B * (I * 3 * H + H * 3 * H + H * A_pad) + 12 * T * B * H
    transcendentals = T * B * (3 * H + A_pad)
    bytes_accessed = sum(a.size * a.dtype.itemsize
                         for a in (x, h0, wih, whh, b_in, bhh_n, wa, ba))
    bytes_accessed += (T * B * A_pad + B * H) * 4

    kernel = functools.partial(_gru_policy_kernel, approx_recip=approx_recip)
    return pl.pallas_call(
        kernel,
        grid=grid,
        in_specs=in_specs,
        out_specs=out_specs,
        out_shape=(
            jax.ShapeDtypeStruct((T, B, A_pad), jnp.float32),
            jax.ShapeDtypeStruct((1, B, H), jnp.float32),
        ),
        input_output_aliases={1: 1},            # h0 -> h_out (in-place state)
        compiler_params=pltpu.CompilerParams(
            dimension_semantics=("parallel",),
            vmem_limit_bytes=32 * 1024 * 1024,
        ),
        cost_estimate=pl.CostEstimate(
            flops=flops,
            transcendentals=transcendentals,
            bytes_accessed=bytes_accessed,
        ),
    )(x, h0, wih, whh, b_in, bhh_n, wa, ba)


def gru_policy_forward(x, h0, fp, *, approx_recip=True):
    """Runs the fused GRU policy. Returns (probs (T,B,num_arms), h_new (1,B,H)).

    The PyTorch module's `.squeeze(0)` + softmax(dim=1) semantics imply T == 1,
    in which case the module's return value is probs[0]."""
    probs_pad, h_new = _gru_policy_pallas(
        x, h0, fp["wih"], fp["whh"], fp["b_in"], fp["bhh_n"], fp["wa"],
        fp["ba"], approx_recip=approx_recip)
    return probs_pad[..., : fp["num_arms"]], h_new


# --------------------------------------------------------------------------- #
# Parameter packing / init / pure-JAX reference
# --------------------------------------------------------------------------- #
def pack_params(p, matmul_dtype=jnp.float32):
    """Convert per-gate (PyTorch-layout) params into the fused kernel layout."""
    A = p["wa"].shape[-1]
    A_pad = ((A + 127) // 128) * 128
    wih_f = jnp.concatenate([p["wih"][0], p["wih"][1], p["wih"][2]], axis=-1)  # (I,3H)
    whh_f = jnp.concatenate([p["whh"][0], p["whh"][1], p["whh"][2]], axis=-1)  # (H,3H)
    bih_f = jnp.concatenate([p["bih"][0], p["bih"][1], p["bih"][2]], axis=-1)  # (1,3H)
    # Fold bhh_r / bhh_z into the precomputed input bias; bhh_n stays inside tanh.
    b_in = bih_f + jnp.concatenate(
        [p["bhh"][0], p["bhh"][1], jnp.zeros_like(p["bhh"][2])], axis=-1)
    wa_pad = jnp.pad(p["wa"], ((0, 0), (0, A_pad - A)))
    # NOTE: -1e30 pad is only safe because logits stay f32 inside the kernel.
    ba_pad = jnp.pad(p["ba"], ((0, 0), (0, A_pad - A)), constant_values=-1e30)
    return {
        "wih": wih_f.astype(matmul_dtype),
        "whh": whh_f.astype(matmul_dtype),
        "b_in": b_in.astype(jnp.float32),
        "bhh_n": p["bhh"][2].astype(jnp.float32),
        "wa": wa_pad.astype(matmul_dtype),
        "ba": ba_pad.astype(jnp.float32),
        "num_arms": A,
    }


def init_params(key, input_size, hidden_size, num_arms):
    """Deterministic init mirroring PyTorch default uniform(-1/sqrt(H), 1/sqrt(H))."""
    ks = jax.random.split(key, 6)
    kg = 1.0 / jnp.sqrt(hidden_size)
    u = lambda k, shape, b: jax.random.uniform(k, shape, jnp.float32, -b, b)
    return {
        "wih": u(ks[0], (3, input_size, hidden_size), kg),
        "whh": u(ks[1], (3, hidden_size, hidden_size), kg),
        "bih": u(ks[2], (3, 1, hidden_size), kg),
        "bhh": u(ks[3], (3, 1, hidden_size), kg),
        "wa":  u(ks[4], (hidden_size, num_arms), kg),
        "ba":  u(ks[5], (1, num_arms), kg),
    }


def gru_policy_ref(x, h0, p):
    """Pure-JAX f32 reference of the same forward (all timesteps)."""
    T = x.shape[0]
    h = h0[0]
    outs = []
    for t in range(T):
        xt = x[t]
        r = jax.nn.sigmoid(xt @ p["wih"][0] + p["bih"][0] + h @ p["whh"][0] + p["bhh"][0])
        z = jax.nn.sigmoid(xt @ p["wih"][1] + p["bih"][1] + h @ p["whh"][1] + p["bhh"][1])
        n = jnp.tanh(xt @ p["wih"][2] + p["bih"][2] + r * (h @ p["whh"][2] + p["bhh"][2]))
        h = (1.0 - z) * n + z * h
        outs.append(jax.nn.softmax(h @ p["wa"] + p["ba"], axis=-1))
    return jnp.stack(outs), h[None]


# --------------------------------------------------------------------------- #
# Demo / correctness check
# --------------------------------------------------------------------------- #
if __name__ == "__main__":
    # Small shapes consistent with the module's intended use (scalar observation
    # per environment, bandit policy).  H=128 keeps all stores lane-dense; B=8
    # fills the minimum sublane count (production: H=256, B as large as possible).
    I, H, A, B = 1, 128, 8, 8

    key = jax.random.PRNGKey(0)
    k_p, k_x1, k_x2, k_h = jax.random.split(key, 4)
    params = init_params(k_p, I, H, A)
    init_state = jax.random.normal(k_h, (1, B, H), jnp.float32) * 0.1  # prev_state

    # ---- Check 1: intended single-step use (T == 1), f32 weights, exact divide.
    fused_f32 = pack_params(params, matmul_dtype=jnp.float32)
    x1 = jax.random.normal(k_x1, (1, B, I), jnp.float32)
    probs_ref1, h_ref1 = gru_policy_ref(x1, init_state, params)
    probs1, h1 = gru_policy_forward(x1, init_state, fused_f32, approx_recip=False)
    probs1, h1 = jax.block_until_ready((probs1, h1))
    probs1 = probs1[0]                                   # module's squeeze(0), T == 1
    assert probs1.shape == (B, A) and h1.shape == (1, B, H)
    assert jnp.allclose(probs1, probs_ref1[0], atol=1e-5, rtol=1e-5)
    assert jnp.allclose(h1, h_ref1, atol=1e-5, rtol=1e-5)
    assert jnp.allclose(jnp.sum(probs1, axis=-1), 1.0, atol=1e-5)

    # ---- Check 2: production config — bf16 matmul weights (f32 accumulate,
    # f32 elementwise/softmax), approximate EUP reciprocal, multi-step recurrence.
    fused_bf16 = pack_params(params, matmul_dtype=jnp.bfloat16)
    x2 = jax.random.normal(k_x2, (4, B, I), jnp.float32)
    probs_ref2, h_ref2 = gru_policy_ref(x2, init_state, params)
    probs2, h2 = gru_policy_forward(x2, init_state, fused_bf16, approx_recip=True)
    probs2, h2 = jax.block_until_ready((probs2, h2))
    assert probs2.shape == (4, B, A) and h2.shape == (1, B, H)
    assert jnp.allclose(probs2, probs_ref2, atol=2e-2, rtol=2e-2)
    assert jnp.allclose(h2, h_ref2, atol=3e-2, rtol=3e-2)
    assert jnp.allclose(jnp.sum(probs2, axis=-1), 1.0, atol=1e-2)

    print("KERNEL_OK")
</pallas_src>

<mosaic_0001>
module attributes {stable_mosaic.version = 11 : i64} {
  func.func @_gru_policy_kernel(%arg0: i32, %arg1: memref<1x8x1xf32, #tpu.memory_space<vmem>>, %arg2: memref<1x8x128xf32, #tpu.memory_space<vmem>>, %arg3: memref<1x384xf32, #tpu.memory_space<vmem>>, %arg4: memref<128x384xf32, #tpu.memory_space<vmem>>, %arg5: memref<1x384xf32, #tpu.memory_space<vmem>>, %arg6: memref<1x128xf32, #tpu.memory_space<vmem>>, %arg7: memref<128x128xf32, #tpu.memory_space<vmem>>, %arg8: memref<1x128xf32, #tpu.memory_space<vmem>>, %arg9: memref<1x8x128xf32, #tpu.memory_space<vmem>>, %arg10: memref<1x8x128xf32, #tpu.memory_space<vmem>>) attributes {dimension_semantics = [#tpu.dimension_semantics<parallel>], iteration_bounds = array<i64: 1>, scalar_prefetch = 0 : i64, scratch_operands = 0 : i64, tpu.core_type = #tpu.core_type<tc>, window_params = [{transform_indices = @transform_0, window_bounds = array<i64: 1, 8, 1>}, {transform_indices = @transform_1, window_bounds = array<i64: 1, 8, 128>}, {pipeline_mode = #tpu.pipeline_mode<synchronous>, transform_indices = @transform_2, window_bounds = array<i64: 1, 384>}, {pipeline_mode = #tpu.pipeline_mode<synchronous>, transform_indices = @transform_3, window_bounds = array<i64: 128, 384>}, {pipeline_mode = #tpu.pipeline_mode<synchronous>, transform_indices = @transform_4, window_bounds = array<i64: 1, 384>}, {pipeline_mode = #tpu.pipeline_mode<synchronous>, transform_indices = @transform_5, window_bounds = array<i64: 1, 128>}, {pipeline_mode = #tpu.pipeline_mode<synchronous>, transform_indices = @transform_6, window_bounds = array<i64: 128, 128>}, {pipeline_mode = #tpu.pipeline_mode<synchronous>, transform_indices = @transform_7, window_bounds = array<i64: 1, 128>}, {transform_indices = @transform_8, window_bounds = array<i64: 1, 8, 128>}, {transform_indices = @transform_9, window_bounds = array<i64: 1, 8, 128>}]} {
    %c0 = arith.constant 0 : index
    %c0_0 = arith.constant 0 : index
    %c0_1 = arith.constant 0 : index
    %0 = vector.load %arg1[%c0, %c0_0, %c0_1] : memref<1x8x1xf32, #tpu.memory_space<vmem>>, vector<1x8x1xf32>
    %c0_2 = arith.constant 0 : index
    %c0_3 = arith.constant 0 : index
    %1 = vector.load %arg3[%c0_2, %c0_3] : memref<1x384xf32, #tpu.memory_space<vmem>>, vector<1x384xf32>
    %c0_4 = arith.constant 0 : index
    %c0_5 = arith.constant 0 : index
    %2 = vector.load %arg5[%c0_4, %c0_5] : memref<1x384xf32, #tpu.memory_space<vmem>>, vector<1x384xf32>
    %3 = vector.shape_cast %1 : vector<1x384xf32> to vector<1x1x384xf32>
    %4 = vector.broadcast %0 : vector<1x8x1xf32> to vector<1x8x384xf32>
    %5 = vector.broadcast %3 : vector<1x1x384xf32> to vector<1x8x384xf32>
    %6 = arith.mulf %4, %5 : vector<1x8x384xf32>
    %7 = vector.shape_cast %2 : vector<1x384xf32> to vector<1x1x384xf32>
    %8 = vector.broadcast %7 : vector<1x1x384xf32> to vector<1x8x384xf32>
    %9 = arith.addf %6, %8 : vector<1x8x384xf32>
    %c0_6 = arith.constant 0 : index
    %c0_7 = arith.constant 0 : index
    %10 = vector.load %arg4[%c0_6, %c0_7] : memref<128x384xf32, #tpu.memory_space<vmem>>, vector<128x384xf32>
    %c0_8 = arith.constant 0 : index
    %c0_9 = arith.constant 0 : index
    %11 = vector.load %arg6[%c0_8, %c0_9] : memref<1x128xf32, #tpu.memory_space<vmem>>, vector<1x128xf32>
    %c0_10 = arith.constant 0 : index
    %c0_11 = arith.constant 0 : index
    %c0_12 = arith.constant 0 : index
    %12 = vector.load %arg2[%c0_10, %c0_11, %c0_12] : memref<1x8x128xf32, #tpu.memory_space<vmem>>, vector<1x8x128xf32>
    %13 = vector.shape_cast %12 : vector<1x8x128xf32> to vector<8x128xf32>
    %14 = vector.shape_cast %9 : vector<1x8x384xf32> to vector<8x384xf32>
    %cst = arith.constant dense<0.000000e+00> : vector<8x384xf32>
    %15 = tpu.matmul %13, %10, %cst {dimension_numbers = #tpu.dot_dimension_numbers<[1], [0], [0], [1], [0, 0, 1, 1], [], []>} : vector<8x128xf32>, vector<128x384xf32>, vector<8x384xf32> -> vector<8x384xf32>
    %16 = vector.extract_strided_slice %14 {offsets = [0, 0], sizes = [8, 128], strides = [1, 1]} : vector<8x384xf32> to vector<8x128xf32>
    %17 = vector.extract_strided_slice %15 {offsets = [0, 0], sizes = [8, 128], strides = [1, 1]} : vector<8x384xf32> to vector<8x128xf32>
    %18 = arith.addf %16, %17 : vector<8x128xf32>
    %19 = arith.negf %18 : vector<8x128xf32>
    %20 = math.exp %19 : vector<8x128xf32>
    %cst_13 = arith.constant 1.000000e+00 : f32
    %21 = vector.broadcast %cst_13 : f32 to vector<8x128xf32>
    %22 = arith.addf %21, %20 : vector<8x128xf32>
    %23 = arith.divf %21, %22 : vector<8x128xf32>
    %24 = vector.extract_strided_slice %14 {offsets = [0, 128], sizes = [8, 128], strides = [1, 1]} : vector<8x384xf32> to vector<8x128xf32>
    %25 = vector.extract_strided_slice %15 {offsets = [0, 128], sizes = [8, 128], strides = [1, 1]} : vector<8x384xf32> to vector<8x128xf32>
    %26 = arith.addf %24, %25 : vector<8x128xf32>
    %27 = arith.negf %26 : vector<8x128xf32>
    %28 = math.exp %27 : vector<8x128xf32>
    %cst_14 = arith.constant 1.000000e+00 : f32
    %29 = vector.broadcast %cst_14 : f32 to vector<8x128xf32>
    %30 = arith.addf %29, %28 : vector<8x128xf32>
    %31 = arith.divf %29, %30 : vector<8x128xf32>
    %32 = vector.extract_strided_slice %14 {offsets = [0, 256], sizes = [8, 128], strides = [1, 1]} : vector<8x384xf32> to vector<8x128xf32>
    %33 = vector.extract_strided_slice %15 {offsets = [0, 256], sizes = [8, 128], strides = [1, 1]} : vector<8x384xf32> to vector<8x128xf32>
    %34 = vector.broadcast %11 : vector<1x128xf32> to vector<8x128xf32>
    %35 = arith.addf %33, %34 : vector<8x128xf32>
    %36 = arith.mulf %23, %35 : vector<8x128xf32>
    %37 = arith.addf %32, %36 : vector<8x128xf32>
    %38 = math.tanh %37 : vector<8x128xf32>
    %cst_15 = arith.constant 1.000000e+00 : f32
    %39 = vector.broadcast %cst_15 : f32 to vector<8x128xf32>
    %40 = arith.subf %39, %31 : vector<8x128xf32>
    %41 = arith.mulf %40, %38 : vector<8x128xf32>
    %42 = arith.mulf %31, %13 : vector<8x128xf32>
    %43 = arith.addf %41, %42 : vector<8x128xf32>
    %c0_16 = arith.constant 0 : index
    %c0_17 = arith.constant 0 : index
    %c0_18 = arith.constant 0 : index
    %44 = vector.load %arg10[%c0_16, %c0_17, %c0_18] : memref<1x8x128xf32, #tpu.memory_space<vmem>>, vector<1x8x128xf32>
    %45 = vector.shape_cast %44 : vector<1x8x128xf32> to vector<8x128xf32>
    %46 = vector.shape_cast %43 : vector<8x128xf32> to vector<1x8x128xf32>
    tpu.vector_store %arg10[%c0_16, %c0_17, %c0_18], %46 {strides = array<i32>} : memref<1x8x128xf32, #tpu.memory_space<vmem>>, vector<1x8x128xf32>,
    %c0_19 = arith.constant 0 : index
    %c0_20 = arith.constant 0 : index
    %47 = vector.load %arg7[%c0_19, %c0_20] : memref<128x128xf32, #tpu.memory_space<vmem>>, vector<128x128xf32>
    %cst_21 = arith.constant dense<0.000000e+00> : vector<8x128xf32>
    %48 = tpu.matmul %43, %47, %cst_21 {dimension_numbers = #tpu.dot_dimension_numbers<[1], [0], [0], [1], [0, 0, 1, 1], [], []>} : vector<8x128xf32>, vector<128x128xf32>, vector<8x128xf32> -> vector<8x128xf32>
    %c0_22 = arith.constant 0 : index
    %c0_23 = arith.constant 0 : index
    %49 = vector.load %arg8[%c0_22, %c0_23] : memref<1x128xf32, #tpu.memory_space<vmem>>, vector<1x128xf32>
    %50 = vector.broadcast %49 : vector<1x128xf32> to vector<8x128xf32>
    %51 = arith.addf %48, %50 : vector<8x128xf32>
    %cst_24 = arith.constant dense<0xFF800000> : vector<8xf32>
    %52 = vector.multi_reduction <maximumf>, %51, %cst_24 [1] : vector<8x128xf32> to vector<8xf32>
    %53 = vector.shape_cast %52 : vector<8xf32> to vector<8x1xf32>
    %54 = vector.broadcast %53 : vector<8x1xf32> to vector<8x128xf32>
    %55 = arith.subf %51, %54 : vector<8x128xf32>
    %56 = math.exp %55 : vector<8x128xf32>
    %cst_25 = arith.constant dense<0.000000e+00> : vector<8xf32>
    %57 = vector.multi_reduction <add>, %56, %cst_25 [1] : vector<8x128xf32> to vector<8xf32>
    %58 = vector.shape_cast %57 : vector<8xf32> to vector<8x1xf32>
    %59 = vector.broadcast %58 : vector<8x1xf32> to vector<8x128xf32>
    %60 = arith.divf %56, %59 : vector<8x128xf32>
    %61 = vector.shape_cast %60 : vector<8x128xf32> to vector<1x8x128xf32>
    %c0_26 = arith.constant 0 : index
    %c0_27 = arith.constant 0 : index
    %c0_28 = arith.constant 0 : index
    %62 = vector.load %arg9[%c0_26, %c0_27, %c0_28] : memref<1x8x128xf32, #tpu.memory_space<vmem>>, vector<1x8x128xf32>
    tpu.vector_store %arg9[%c0_26, %c0_27, %c0_28], %61 {strides = array<i32>} : memref<1x8x128xf32, #tpu.memory_space<vmem>>, vector<1x8x128xf32>,
    return
  }
  func.func @transform_0(%arg0: i32) -> (i32, i32, i32) {
    %c0_i32 = arith.constant 0 : i32
    %c0_i32_0 = arith.constant 0 : i32
    %c0_i32_1 = arith.constant 0 : i32
    return %c0_i32, %arg0, %c0_i32_0 : i32, i32, i32
  }
  func.func @transform_1(%arg0: i32) -> (i32, i32, i32) {
    %c0_i32 = arith.constant 0 : i32
    %c0_i32_0 = arith.constant 0 : i32
    %c0_i32_1 = arith.constant 0 : i32
    return %c0_i32, %arg0, %c0_i32_0 : i32, i32, i32
  }
  func.func @transform_2(%arg0: i32) -> (i32, i32) {
    %c0_i32 = arith.constant 0 : i32
    %c0_i32_0 = arith.constant 0 : i32
    %c0_i32_1 = arith.constant 0 : i32
    return %c0_i32, %c0_i32_0 : i32, i32
  }
  func.func @transform_3(%arg0: i32) -> (i32, i32) {
    %c0_i32 = arith.constant 0 : i32
    %c0_i32_0 = arith.constant 0 : i32
    %c0_i32_1 = arith.constant 0 : i32
    return %c0_i32, %c0_i32_0 : i32, i32
  }
  func.func @transform_4(%arg0: i32) -> (i32, i32) {
    %c0_i32 = arith.constant 0 : i32
    %c0_i32_0 = arith.constant 0 : i32
    %c0_i32_1 = arith.constant 0 : i32
    return %c0_i32, %c0_i32_0 : i32, i32
  }
  func.func @transform_5(%arg0: i32) -> (i32, i32) {
    %c0_i32 = arith.constant 0 : i32
    %c0_i32_0 = arith.constant 0 : i32
    %c0_i32_1 = arith.constant 0 : i32
    return %c0_i32, %c0_i32_0 : i32, i32
  }
  func.func @transform_6(%arg0: i32) -> (i32, i32) {
    %c0_i32 = arith.constant 0 : i32
    %c0_i32_0 = arith.constant 0 : i32
    %c0_i32_1 = arith.constant 0 : i32
    return %c0_i32, %c0_i32_0 : i32, i32
  }
  func.func @transform_7(%arg0: i32) -> (i32, i32) {
    %c0_i32 = arith.constant 0 : i32
    %c0_i32_0 = arith.constant 0 : i32
    %c0_i32_1 = arith.constant 0 : i32
    return %c0_i32, %c0_i32_0 : i32, i32
  }
  func.func @transform_8(%arg0: i32) -> (i32, i32, i32) {
    %c0_i32 = arith.constant 0 : i32
    %c0_i32_0 = arith.constant 0 : i32
    %c0_i32_1 = arith.constant 0 : i32
    return %c0_i32, %arg0, %c0_i32_0 : i32, i32, i32
  }
  func.func @transform_9(%arg0: i32) -> (i32, i32, i32) {
    %c0_i32 = arith.constant 0 : i32
    %c0_i32_0 = arith.constant 0 : i32
    %c0_i32_1 = arith.constant 0 : i32
    return %c0_i32, %arg0, %c0_i32_0 : i32, i32, i32
  }
}

</mosaic_0001>

<llo_original>
// kernel: _gru_policy_pallas.1
$region0: #{_gru_policy_pallas.1}
  #allocation0 [shape = 'u32[]', space=smem, size = 0x4, offset = 0x4, fixed_abs, tag = 'smem constant byte address 0x4 - core index']
  #allocation1 [shape = 'u32[144,128]{1,0:T(1,128)}', space=vmem, size = 0x12000, scoped, tag = 'internal scratch']
  %s0 = inlined_call_operand.vmem [shape: f32[1,8,1], index: 0, kind: input, shape index: {}]
  %s1 = inlined_call_operand.hbm [shape: f32[1,8,128], index: 1, kind: input, shape index: {}, may-alias: {1,9}]
  %s2 = inlined_call_operand.vmem [shape: f32[1,384], index: 2, kind: input, shape index: {}]
  %s3 = inlined_call_operand.hbm [shape: f32[128,384], index: 3, kind: input, shape index: {}]
  %s4 = inlined_call_operand.vmem [shape: f32[1,384], index: 4, kind: input, shape index: {}]
  %s5 = inlined_call_operand.vmem [shape: f32[1,128], index: 5, kind: input, shape index: {}]
  %s6 = inlined_call_operand.hbm [shape: f32[128,128], index: 6, kind: input, shape index: {}]
  %s7 = inlined_call_operand.vmem [shape: f32[1,128], index: 7, kind: input, shape index: {}]
  %s8 = inlined_call_operand.hbm [shape: f32[1,8,128], index: 8, kind: output, shape index: {0}]
  %s9 = inlined_call_operand.hbm [shape: f32[1,8,128], index: 9, kind: output, shape index: {1}, may-alias: {1,9}]
  %10 = xla_tuple %s8, %s9
  %s11 = sld [smem:[#allocation0]]
  $region62: #{_gru_policy_pallas.1} parent=0
    _
  %s13 = ssub.s32 1, %s11
  %s14 = scalar_select 0, %s13, %s11
  $region1: #{_gru_policy_pallas.1} parent=0
    #allocation2 [shape = 'u8[4096]{0}', space=vmem, size = 0x1000, scoped, tag = 'input window, operand 1, single buffered']
    #allocation3 [shape = 's32[1]{0}', space=sflag, size = 0x4, scoped, tag = 'scoped memory for _gru_policy_pallas.1']
    #allocation4 [shape = 's32[1]{0}', space=sflag, size = 0x4, scoped, tag = 'scoped memory for _gru_policy_pallas.1']
    #allocation5 [shape = 'u8[196608]{0}', space=vmem, size = 0x30000, scoped, tag = 'input window, operand 3, single buffered']
    #allocation6 [shape = 's32[1]{0}', space=sflag, size = 0x4, scoped, tag = 'scoped memory for _gru_policy_pallas.1']
    #allocation7 [shape = 'u8[65536]{0}', space=vmem, size = 0x10000, scoped, tag = 'input window, operand 6, single buffered']
    #allocation8 [shape = 'u8[4096]{0}', space=vmem, size = 0x1000, scoped, tag = 'output window, operand 0, single buffered']
    #allocation9 [shape = 'u8[4096]{0}', space=vmem, size = 0x1000, scoped, tag = 'output window, operand 1, single buffered']
    #allocation10 [shape = 's32[1]{0}', space=sflag, size = 0x4, scoped, tag = 'scoped memory for _gru_policy_pallas.1']
    %15 = vsyncpa [#allocation3], 0
    %16 = vsyncpa [#allocation6], 0
    %17 = vsyncpa [#allocation4], 0
    %18 = vsyncpa [#allocation10], 0
    // Predicated region
    $region2: #{_gru_policy_pallas.1} parent=1 // pred_check
      _
    $region3: #{_gru_policy_pallas.1} parent=1 // pred_check_branch
      %20 = sbr.rel (0) target = $region5
    $region4: #{_gru_policy_pallas.1} parent=1 // pred_region
      _
    $region5: #{_gru_policy_pallas.1} parent=1 // pred_fallthru
      _
    // Predicated region
    $region6: #{_gru_policy_pallas.1} parent=1 // pred_check
      _
    $region7: #{_gru_policy_pallas.1} parent=1 // pred_check_branch
      %22 = sbr.rel (0) target = $region9
    $region8: #{_gru_policy_pallas.1} parent=1 // pred_region
      %s24 = ssub.s32 128, 128
      %25 = vsyncadd [#allocation3], %s24
      %s27 = sshll.u32 [#allocation2], 4
      %s28 = int_to_ptr.vmem [resolvable:$true] %s27
      %30 = dma.hbm_to_vmem [thread:$0]  %s1, 128, %s28, [#allocation3]
    $region9: #{_gru_policy_pallas.1} parent=1 // pred_fallthru
      _
    // Predicated region
    $region10: #{_gru_policy_pallas.1} parent=1 // pred_check
      _
    $region11: #{_gru_policy_pallas.1} parent=1 // pred_check_branch
      %32 = sbr.rel (0) target = $region13
    $region12: #{_gru_policy_pallas.1} parent=1 // pred_region
      _
    $region13: #{_gru_policy_pallas.1} parent=1 // pred_fallthru
      _
    // Predicated region
    $region14: #{_gru_policy_pallas.1} parent=1 // pred_check
      _
    $region15: #{_gru_policy_pallas.1} parent=1 // pred_check_branch
      %34 = sbr.rel (0) target = $region17
    $region16: #{_gru_policy_pallas.1} parent=1 // pred_region
      %s36 = ssub.s32 6144, 6144
      %37 = vsyncadd [#allocation6], %s36
      %s38 = sshll.u32 [#allocation5], 4
      %s39 = int_to_ptr.vmem [resolvable:$true] %s38
      %44 = dma.hbm_to_vmem [thread:$0]  %s3, 6144, %s39, [#allocation6], 384, 384, 24
    $region17: #{_gru_policy_pallas.1} parent=1 // pred_fallthru
      _
    // Predicated region
    $region18: #{_gru_policy_pallas.1} parent=1 // pred_check
      _
    $region19: #{_gru_policy_pallas.1} parent=1 // pred_check_branch
      %46 = sbr.rel (0) target = $region21
    $region20: #{_gru_policy_pallas.1} parent=1 // pred_region
      _
    $region21: #{_gru_policy_pallas.1} parent=1 // pred_fallthru
      _
    // Predicated region
    $region22: #{_gru_policy_pallas.1} parent=1 // pred_check
      _
    $region23: #{_gru_policy_pallas.1} parent=1 // pred_check_branch
      %48 = sbr.rel (0) target = $region25
    $region24: #{_gru_policy_pallas.1} parent=1 // pred_region
      _
    $region25: #{_gru_policy_pallas.1} parent=1 // pred_fallthru
      _
    // Predicated region
    $region26: #{_gru_policy_pallas.1} parent=1 // pred_check
      _
    $region27: #{_gru_policy_pallas.1} parent=1 // pred_check_branch
      %50 = sbr.rel (0) target = $region29
    $region28: #{_gru_policy_pallas.1} parent=1 // pred_region
      %s52 = ssub.s32 2048, 2048
      %53 = vsyncadd [#allocation6], %s52
      %s54 = sshll.u32 [#allocation7], 4
      %s55 = int_to_ptr.vmem [resolvable:$true] %s54
      %60 = dma.hbm_to_vmem [thread:$0]  %s6, 2048, %s55, [#allocation6], 128, 128, 8
    $region29: #{_gru_policy_pallas.1} parent=1 // pred_fallthru
      _
    // Predicated region
    $region30: #{_gru_policy_pallas.1} parent=1 // pred_check
      _
    $region31: #{_gru_policy_pallas.1} parent=1 // pred_check_branch
      %62 = sbr.rel (0) target = $region33
    $region32: #{_gru_policy_pallas.1} parent=1 // pred_region
      _
    $region33: #{_gru_policy_pallas.1} parent=1 // pred_fallthru
      _
    // Predicated region
    $region34: #{_gru_policy_pallas.1} parent=1 // pred_check
      _
    $region35: #{_gru_policy_pallas.1} parent=1 // pred_check_branch
      %64 = sbr.rel (0) target = $region37
    $region36: #{_gru_policy_pallas.1} parent=1 // pred_region
      %65 = dma.done [#allocation3], 128
    $region37: #{_gru_policy_pallas.1} parent=1 // pred_fallthru
      _
    // Predicated region
    $region38: #{_gru_policy_pallas.1} parent=1 // pred_check
      _
    $region39: #{_gru_policy_pallas.1} parent=1 // pred_check_branch
      %67 = sbr.rel (0) target = $region41
    $region40: #{_gru_policy_pallas.1} parent=1 // pred_region
      %68 = dma.done [#allocation6], 6144
    $region41: #{_gru_policy_pallas.1} parent=1 // pred_fallthru
      _
    // Predicated region
    $region42: #{_gru_policy_pallas.1} parent=1 // pred_check
      _
    $region43: #{_gru_policy_pallas.1} parent=1 // pred_check_branch
      %70 = sbr.rel (0) target = $region45
    $region44: #{_gru_policy_pallas.1} parent=1 // pred_region
      %71 = dma.done [#allocation6], 2048
    $region45: #{_gru_policy_pallas.1} parent=1 // pred_fallthru
      _
    %v72 = vld [vmem:[%s0] sm:$0xff]
    %v73 = vld [vmem:[%s2] sm:$0x7]
    %v74 = vld [vmem:[%s4] sm:$0x7]
    %76 = vset.pattern.permute.xlu0 0
    %77 = vperm.xlu0 %76, %v72
    %v78 = vpop.permute.xlu0 %77
    %v81 = vlaneseq
    %v82 = vshrl.u32 %v81, 7
    %v83 = vsub.s32 0, %v82
    %v84 = vrot.slane %v73, %v83
    %v85 = vlaneseq
    %v86 = vshrl.u32 %v85, 7
    %v87 = vsub.s32 1, %v86
    %v88 = vrot.slane %v73, %v87
    %v89 = vlaneseq
    %v90 = vshrl.u32 %v89, 7
    %v91 = vsub.s32 2, %v90
    %v92 = vrot.slane %v73, %v91
    %v96 = vmul.f32 %v78, %v84
    %v97 = vmul.f32 %v78, %v88
    %v98 = vmul.f32 %v78, %v92
    %v100 = vlaneseq
    %v101 = vshrl.u32 %v100, 7
    %v102 = vsub.s32 0, %v101
    %v103 = vrot.slane %v74, %v102
    %v104 = vlaneseq
    %v105 = vshrl.u32 %v104, 7
    %v106 = vsub.s32 1, %v105
    %v107 = vrot.slane %v74, %v106
    %v108 = vlaneseq
    %v109 = vshrl.u32 %v108, 7
    %v110 = vsub.s32 2, %v109
    %v111 = vrot.slane %v74, %v110
    %v115 = vadd.f32 %v96, %v103
    %v116 = vadd.f32 %v97, %v107
    %v117 = vadd.f32 %v98, %v111
    %v118 = vld [vmem:[#allocation5] sm:$0xff]
    %v119 = vld [vmem:[#allocation5 + $0x8] sm:$0xff]
    %v120 = vld [vmem:[#allocation5 + $0x10] sm:$0xff]
    %v121 = vld [vmem:[#allocation5 + $0x18] sm:$0xff]
    %v122 = vld [vmem:[#allocation5 + $0x20] sm:$0xff]
    %v123 = vld [vmem:[#allocation5 + $0x28] sm:$0xff]
    %v124 = vld [vmem:[#allocation5 + $0x30] sm:$0xff]
    %v125 = vld [vmem:[#allocation5 + $0x38] sm:$0xff]
    %v126 = vld [vmem:[#allocation5 + $0x40] sm:$0xff]
    %v127 = vld [vmem:[#allocation5 + $0x48] sm:$0xff]
    %v128 = vld [vmem:[#allocation5 + $0x50] sm:$0xff]
    %v129 = vld [vmem:[#allocation5 + $0x58] sm:$0xff]
    %v130 = vld [vmem:[#allocation5 + $0x60] sm:$0xff]
    %v131 = vld [vmem:[#allocation5 + $0x68] sm:$0xff]
    %v132 = vld [vmem:[#allocation5 + $0x70] sm:$0xff]
    %v133 = vld [vmem:[#allocation5 + $0x78] sm:$0xff]
    %v134 = vld [vmem:[#allocation5 + $0x80] sm:$0xff]
    %v135 = vld [vmem:[#allocation5 + $0x88] sm:$0xff]
    %v136 = vld [vmem:[#allocation5 + $0x90] sm:$0xff]
    %v137 = vld [vmem:[#allocation5 + $0x98] sm:$0xff]
    %v138 = vld [vmem:[#allocation5 + $0xa0] sm:$0xff]
    %v139 = vld [vmem:[#allocation5 + $0xa8] sm:$0xff]
    %v140 = vld [vmem:[#allocation5 + $0xb0] sm:$0xff]
    %v141 = vld [vmem:[#allocation5 + $0xb8] sm:$0xff]
    %v142 = vld [vmem:[#allocation5 + $0xc0] sm:$0xff]
    %v143 = vld [vmem:[#allocation5 + $0xc8] sm:$0xff]
    %v144 = vld [vmem:[#allocation5 + $0xd0] sm:$0xff]
    %v145 = vld [vmem:[#allocation5 + $0xd8] sm:$0xff]
    %v146 = vld [vmem:[#allocation5 + $0xe0] sm:$0xff]
    %v147 = vld [vmem:[#allocation5 + $0xe8] sm:$0xff]
    %v148 = vld [vmem:[#allocation5 + $0xf0] sm:$0xff]
    %v149 = vld [vmem:[#allocation5 + $0xf8] sm:$0xff]
    %v150 = vld [vmem:[#allocation5 + $0x100] sm:$0xff]
    %v151 = vld [vmem:[#allocation5 + $0x108] sm:$0xff]
    %v152 = vld [vmem:[#allocation5 + $0x110] sm:$0xff]
    %v153 = vld [vmem:[#allocation5 + $0x118] sm:$0xff]
    %v154 = vld [vmem:[#allocation5 + $0x120] sm:$0xff]
    %v155 = vld [vmem:[#allocation5 + $0x128] sm:$0xff]
    %v156 = vld [vmem:[#allocation5 + $0x130] sm:$0xff]
    %v157 = vld [vmem:[#allocation5 + $0x138] sm:$0xff]
    %v158 = vld [vmem:[#allocation5 + $0x140] sm:$0xff]
    %v159 = vld [vmem:[#allocation5 + $0x148] sm:$0xff]
    %v160 = vld [vmem:[#allocation5 + $0x150] sm:$0xff]
    %v161 = vld [vmem:[#allocation5 + $0x158] sm:$0xff]
    %v162 = vld [vmem:[#allocation5 + $0x160] sm:$0xff]
    %v163 = vld [vmem:[#allocation5 + $0x168] sm:$0xff]
    %v164 = vld [vmem:[#allocation5 + $0x170] sm:$0xff]
    %v165 = vld [vmem:[#allocation5 + $0x178] sm:$0xff]
    %v166 = vld [vmem:[%s5] sm:$0x1]
    %v167 = vld [vmem:[#allocation2] sm:$0xff]
    %168 = vmatprep.subr.mxu0 %v119
    %169 = vmatpush1.msra.mxu0 %v118
    %170 = vmatprep.subr.mxu0 %v122
    %171 = vmatpush1.msra.mxu0 %v121
    %172 = vmatprep.subr.mxu0 %v125
    %173 = vmatpush1.msra.mxu0 %v124
    %174 = vmatprep.subr.mxu0 %v128
    %175 = vmatpush1.msra.mxu0 %v127
    %176 = vmatprep.subr.mxu0 %v131
    %177 = vmatpush1.msra.mxu0 %v130
    %178 = vmatprep.subr.mxu0 %v134
    %179 = vmatpush1.msra.mxu0 %v133
    %180 = vmatprep.subr.mxu0 %v137
    %181 = vmatpush1.msra.mxu0 %v136
    %182 = vmatprep.subr.mxu0 %v140
    %183 = vmatpush1.msra.mxu0 %v139
    %184 = vmatprep.subr.mxu0 %v143
    %185 = vmatpush1.msra.mxu0 %v142
    %186 = vmatprep.subr.mxu0 %v146
    %187 = vmatpush1.msra.mxu0 %v145
    %188 = vmatprep.subr.mxu0 %v149
    %189 = vmatpush1.msra.mxu0 %v148
    %190 = vmatprep.subr.mxu0 %v152
    %191 = vmatpush1.msra.mxu0 %v151
    %192 = vmatprep.subr.mxu0 %v155
    %193 = vmatpush1.msra.mxu0 %v154
    %194 = vmatprep.subr.mxu0 %v158
    %195 = vmatpush1.msra.mxu0 %v157
    %196 = vmatprep.subr.mxu0 %v161
    %197 = vmatpush1.msra.mxu0 %v160
    %198 = vmatprep.subr.mxu0 %v164
    %199 = vmatpush1.msra.mxu0 %v163
    %200 = vmatprep.subr.mxu0 0.0
    %201 = vmatpush1.msra.mxu0 0.0
    %202 = vmatprep.subr.mxu0 0.0
    %203 = vmatpush1.msra.mxu0 0.0
    %204 = vmatprep.subr.mxu0 0.0
    %205 = vmatpush1.msra.mxu0 0.0
    %206 = vmatprep.subr.mxu0 0.0
    %207 = vmatpush1.msra.mxu0 0.0
    %208 = vmatprep.subr.mxu0 0.0
    %209 = vmatpush1.msra.mxu0 0.0
    %210 = vmatprep.subr.mxu0 0.0
    %211 = vmatpush1.msra.mxu0 0.0
    %212 = vmatprep.subr.mxu0 0.0
    %213 = vmatpush1.msra.mxu0 0.0
    %214 = vmatprep.subr.mxu0 0.0
    %215 = vmatpush1.msra.mxu0 0.0
    %216 = vmatprep.subr.mxu0 0.0
    %217 = vmatpush1.msra.mxu0 0.0
    %218 = vmatprep.subr.mxu0 0.0
    %219 = vmatpush1.msra.mxu0 0.0
    %220 = vmatprep.subr.mxu0 0.0
    %221 = vmatpush1.msra.mxu0 0.0
    %222 = vmatprep.subr.mxu0 0.0
    %223 = vmatpush1.msra.mxu0 0.0
    %224 = vmatprep.subr.mxu0 0.0
    %225 = vmatpush1.msra.mxu0 0.0
    %226 = vmatprep.subr.mxu0 0.0
    %227 = vmatpush1.msra.mxu0 0.0
    %228 = vmatprep.subr.mxu0 0.0
    %229 = vmatpush1.msra.mxu0 0.0
    %230 = vmatprep.subr.mxu0 0.0
    %231 = vmatpush1.msra.mxu0 0.0
    %232 = vmatprep.mubr.f32.mxu0 0.0
    %233 = vmatmul.mubr.f32.gmra.mrb[0].mxu0 %v167
    %v234 = vpop.f32.mrb[0].mxu0
    %v235 = vadd.f32 0.0, %v234
    %v236 = vpop.f32.mrb[0].mxu0
    %v237 = vadd.f32 0.0, %v236
    %238 = vdwg.mxu0
    %239 = vmatprep.subr.mxu0 0.0
    %240 = vmatpush1.msra.mxu0 %v120
    %241 = vmatprep.subr.mxu0 0.0
    %242 = vmatpush1.msra.mxu0 %v123
    %243 = vmatprep.subr.mxu0 0.0
    %244 = vmatpush1.msra.mxu0 %v126
    %245 = vmatprep.subr.mxu0 0.0
    %246 = vmatpush1.msra.mxu0 %v129
    %247 = vmatprep.subr.mxu0 0.0
    %248 = vmatpush1.msra.mxu0 %v132
    %249 = vmatprep.subr.mxu0 0.0
    %250 = vmatpush1.msra.mxu0 %v135
    %251 = vmatprep.subr.mxu0 0.0
    %252 = vmatpush1.msra.mxu0 %v138
    %253 = vmatprep.subr.mxu0 0.0
    %254 = vmatpush1.msra.mxu0 %v141
    %255 = vmatprep.subr.mxu0 0.0
    %256 = vmatpush1.msra.mxu0 %v144
    %257 = vmatprep.subr.mxu0 0.0
    %258 = vmatpush1.msra.mxu0 %v147
    %259 = vmatprep.subr.mxu0 0.0
    %260 = vmatpush1.msra.mxu0 %v150
    %261 = vmatprep.subr.mxu0 0.0
    %262 = vmatpush1.msra.mxu0 %v153
    %263 = vmatprep.subr.mxu0 0.0
    %264 = vmatpush1.msra.mxu0 %v156
    %265 = vmatprep.subr.mxu0 0.0
    %266 = vmatpush1.msra.mxu0 %v159
    %267 = vmatprep.subr.mxu0 0.0
    %268 = vmatpush1.msra.mxu0 %v162
    %269 = vmatprep.subr.mxu0 0.0
    %270 = vmatpush1.msra.mxu0 %v165
    %271 = vmatprep.subr.mxu0 0.0
    %272 = vmatpush1.msra.mxu0 0.0
    %273 = vmatprep.subr.mxu0 0.0
    %274 = vmatpush1.msra.mxu0 0.0
    %275 = vmatprep.subr.mxu0 0.0
    %276 = vmatpush1.msra.mxu0 0.0
    %277 = vmatprep.subr.mxu0 0.0
    %278 = vmatpush1.msra.mxu0 0.0
    %279 = vmatprep.subr.mxu0 0.0
    %280 = vmatpush1.msra.mxu0 0.0
    %281 = vmatprep.subr.mxu0 0.0
    %282 = vmatpush1.msra.mxu0 0.0
    %283 = vmatprep.subr.mxu0 0.0
    %284 = vmatpush1.msra.mxu0 0.0
    %285 = vmatprep.subr.mxu0 0.0
    %286 = vmatpush1.msra.mxu0 0.0
    %287 = vmatprep.subr.mxu0 0.0
    %288 = vmatpush1.msra.mxu0 0.0
    %289 = vmatprep.subr.mxu0 0.0
    %290 = vmatpush1.msra.mxu0 0.0
    %291 = vmatprep.subr.mxu0 0.0
    %292 = vmatpush1.msra.mxu0 0.0
    %293 = vmatprep.subr.mxu0 0.0
    %294 = vmatpush1.msra.mxu0 0.0
    %295 = vmatprep.subr.mxu0 0.0
    %296 = vmatpush1.msra.mxu0 0.0
    %297 = vmatprep.subr.mxu0 0.0
    %298 = vmatpush1.msra.mxu0 0.0
    %299 = vmatprep.subr.mxu0 0.0
    %300 = vmatpush1.msra.mxu0 0.0
    %301 = vmatprep.subr.mxu0 0.0
    %302 = vmatpush1.msra.mxu0 0.0
    %303 = vmatprep.mubr.f32.mxu0 0.0
    %304 = vmatmul.mubr.f32.gmra.mrb[0].mxu0 %v167
    %v305 = vpop.f32.mrb[0].mxu0
    %v306 = vadd.f32 0.0, %v305
    %v307 = vpop.f32.mrb[0].mxu0
    %308 = vdwg.mxu0
    %v309 = vadd.f32 %v115, %v235
    %v310 = vxor.u32 %v309, 2147483648
    %v311 = vmul.f32 %v310, 1.442695
    %v312 = vpow.pop %v311
    %v313 = vadd.f32 %v312, 1.0
    %v314 = vrcp.pop %v313
    %v315 = vmul.f32 1.0, %v314
    %v316 = vadd.f32 %v116, %v237
    %v317 = vxor.u32 %v316, 2147483648
    %v318 = vmul.f32 %v317, 1.442695
    %v319 = vpow.pop %v318
    %v320 = vadd.f32 %v319, 1.0
    %v321 = vrcp.pop %v320
    %v322 = vmul.f32 1.0, %v321
    %v324 = vlaneseq
    %v325 = vshrl.u32 %v324, 7
    %v326 = vsub.s32 0, %v325
    %v327 = vrot.slane %v166, %v326
    %v329 = vadd.f32 %v306, %v327
    %v330 = vmul.f32 %v315, %v329
    %v331 = vadd.f32 %v117, %v330
    %v332 = vtanh.pop %v331
    %v333 = vsub.f32 1.0, %v322
    %v334 = vmul.f32 %v333, %v332
    %v335 = vmul.f32 %v322, %v167
    %v336 = vadd.f32 %v334, %v335
    %337 = vst [vmem:[#allocation9] sm:$0xff] %v336
    %v338 = vld [vmem:[#allocation7] sm:$0xff]
    %v339 = vld [vmem:[#allocation7 + $0x8] sm:$0xff]
    %v340 = vld [vmem:[#allocation7 + $0x10] sm:$0xff]
    %v341 = vld [vmem:[#allocation7 + $0x18] sm:$0xff]
    %v342 = vld [vmem:[#allocation7 + $0x20] sm:$0xff]
    %v343 = vld [vmem:[#allocation7 + $0x28] sm:$0xff]
    %v344 = vld [vmem:[#allocation7 + $0x30] sm:$0xff]
    %v345 = vld [vmem:[#allocation7 + $0x38] sm:$0xff]
    %v346 = vld [vmem:[#allocation7 + $0x40] sm:$0xff]
    %v347 = vld [vmem:[#allocation7 + $0x48] sm:$0xff]
    %v348 = vld [vmem:[#allocation7 + $0x50] sm:$0xff]
    %v349 = vld [vmem:[#allocation7 + $0x58] sm:$0xff]
    %v350 = vld [vmem:[#allocation7 + $0x60] sm:$0xff]
    %v351 = vld [vmem:[#allocation7 + $0x68] sm:$0xff]
    %v352 = vld [vmem:[#allocation7 + $0x70] sm:$0xff]
    %v353 = vld [vmem:[#allocation7 + $0x78] sm:$0xff]
    %v354 = vld [vmem:[%s7] sm:$0x1]
    %v356 = vlaneseq
    %v357 = vshrl.u32 %v356, 7
    %v358 = vsub.s32 0, %v357
    %v359 = vrot.slane %v354, %v358
    %361 = vmatprep.subr.mxu0 0.0
    %362 = vmatpush1.msra.mxu0 %v338
    %363 = vmatprep.subr.mxu0 0.0
    %364 = vmatpush1.msra.mxu0 %v339
    %365 = vmatprep.subr.mxu0 0.0
    %366 = vmatpush1.msra.mxu0 %v340
    %367 = vmatprep.subr.mxu0 0.0
    %368 = vmatpush1.msra.mxu0 %v341
    %369 = vmatprep.subr.mxu0 0.0
    %370 = vmatpush1.msra.mxu0 %v342
    %371 = vmatprep.subr.mxu0 0.0
    %372 = vmatpush1.msra.mxu0 %v343
    %373 = vmatprep.subr.mxu0 0.0
    %374 = vmatpush1.msra.mxu0 %v344
    %375 = vmatprep.subr.mxu0 0.0
    %376 = vmatpush1.msra.mxu0 %v345
    %377 = vmatprep.subr.mxu0 0.0
    %378 = vmatpush1.msra.mxu0 %v346
    %379 = vmatprep.subr.mxu0 0.0
    %380 = vmatpush1.msra.mxu0 %v347
    %381 = vmatprep.subr.mxu0 0.0
    %382 = vmatpush1.msra.mxu0 %v348
    %383 = vmatprep.subr.mxu0 0.0
    %384 = vmatpush1.msra.mxu0 %v349
    %385 = vmatprep.subr.mxu0 0.0
    %386 = vmatpush1.msra.mxu0 %v350
    %387 = vmatprep.subr.mxu0 0.0
    %388 = vmatpush1.msra.mxu0 %v351
    %389 = vmatprep.subr.mxu0 0.0
    %390 = vmatpush1.msra.mxu0 %v352
    %391 = vmatprep.subr.mxu0 0.0
    %392 = vmatpush1.msra.mxu0 %v353
    %393 = vmatprep.subr.mxu0 0.0
    %394 = vmatpush1.msra.mxu0 0.0
    %395 = vmatprep.subr.mxu0 0.0
    %396 = vmatpush1.msra.mxu0 0.0
    %397 = vmatprep.subr.mxu0 0.0
    %398 = vmatpush1.msra.mxu0 0.0
    %399 = vmatprep.subr.mxu0 0.0
    %400 = vmatpush1.msra.mxu0 0.0
    %401 = vmatprep.subr.mxu0 0.0
    %402 = vmatpush1.msra.mxu0 0.0
    %403 = vmatprep.subr.mxu0 0.0
    %404 = vmatpush1.msra.mxu0 0.0
    %405 = vmatprep.subr.mxu0 0.0
    %406 = vmatpush1.msra.mxu0 0.0
    %407 = vmatprep.subr.mxu0 0.0
    %408 = vmatpush1.msra.mxu0 0.0
    %409 = vmatprep.subr.mxu0 0.0
    %410 = vmatpush1.msra.mxu0 0.0
    %411 = vmatprep.subr.mxu0 0.0
    %412 = vmatpush1.msra.mxu0 0.0
    %413 = vmatprep.subr.mxu0 0.0
    %414 = vmatpush1.msra.mxu0 0.0
    %415 = vmatprep.subr.mxu0 0.0
    %416 = vmatpush1.msra.mxu0 0.0
    %417 = vmatprep.subr.mxu0 0.0
    %418 = vmatpush1.msra.mxu0 0.0
    %419 = vmatprep.subr.mxu0 0.0
    %420 = vmatpush1.msra.mxu0 0.0
    %421 = vmatprep.subr.mxu0 0.0
    %422 = vmatpush1.msra.mxu0 0.0
    %423 = vmatprep.subr.mxu0 0.0
    %424 = vmatpush1.msra.mxu0 0.0
    %425 = vmatprep.mubr.f32.mxu0 0.0
    %426 = vmatmul.mubr.f32.gmra.mrb[0].mxu0 %v336
    %v427 = vpop.f32.mrb[0].mxu0
    %v428 = vadd.f32 %v359, %v427
    %v429 = vpop.f32.mrb[0].mxu0
    %430 = vdwg.mxu0
    %431 = vmax.xlane.f32.xlu0 %v428
    %v432 = vpop.xlane.xlu0 %431
    %v433 = vsub.f32 %v428, %v432
    %v434 = vmul.f32 %v433, 1.442695
    %v435 = vpow.pop %v434
    %436 = vadd.xlane.f32.xlu0 %v435
    %v437 = vpop.xlane.xlu0 %436
    %v438 = vrcp.pop %v437
    %v439 = vmul.f32 %v435, %v438
    %440 = vst [vmem:[#allocation8] sm:$0xff] %v439
    // Predicated region
    $region46: #{_gru_policy_pallas.1} parent=1 // pred_check
      _
    $region47: #{_gru_policy_pallas.1} parent=1 // pred_check_branch
      %442 = sbr.rel (0) target = $region49
    $region48: #{_gru_policy_pallas.1} parent=1 // pred_region
      %s444 = ssub.s32 128, 128
      %445 = vsyncadd [#allocation4], %s444
      %s447 = sshll.u32 [#allocation8], 4
      %s448 = int_to_ptr.vmem [resolvable:$true] %s447
      %450 = dma.vmem_to_hbm [thread:$0]  %s448, 128, %s8, [#allocation4]
    $region49: #{_gru_policy_pallas.1} parent=1 // pred_fallthru
      _
    // Predicated region
    $region50: #{_gru_policy_pallas.1} parent=1 // pred_check
      _
    $region51: #{_gru_policy_pallas.1} parent=1 // pred_check_branch
      %452 = sbr.rel (0) target = $region53
    $region52: #{_gru_policy_pallas.1} parent=1 // pred_region
      %s454 = ssub.s32 128, 128
      %455 = vsyncadd [#allocation10], %s454
      %s457 = sshll.u32 [#allocation9], 4
      %s458 = int_to_ptr.vmem [resolvable:$true] %s457
      %460 = dma.vmem_to_hbm [thread:$0]  %s458, 128, %s9, [#allocation10]
    $region53: #{_gru_policy_pallas.1} parent=1 // pred_fallthru
      _
    // Predicated region
    $region54: #{_gru_policy_pallas.1} parent=1 // pred_check
      _
    $region55: #{_gru_policy_pallas.1} parent=1 // pred_check_branch
      %462 = sbr.rel (0) target = $region57
    $region56: #{_gru_policy_pallas.1} parent=1 // pred_region
      %463 = dma.done [#allocation4], 128
    $region57: #{_gru_policy_pallas.1} parent=1 // pred_fallthru
      _
    // Predicated region
    $region58: #{_gru_policy_pallas.1} parent=1 // pred_check
      _
    $region59: #{_gru_policy_pallas.1} parent=1 // pred_check_branch
      %465 = sbr.rel (0) target = $region61
    $region60: #{_gru_policy_pallas.1} parent=1 // pred_region
      %466 = dma.done [#allocation10], 128
    $region61: #{_gru_policy_pallas.1} parent=1 // pred_fallthru
      _
    %467 = vsyncpa [#allocation3], 1
    %468 = vsyncpa [#allocation6], 1
    %469 = vsyncpa [#allocation4], 1
    %470 = vsyncpa [#allocation10], 1

</llo_original>
